<compile_context>
chip_gen: v6e
topology: v6e:2x2x1
jax: 0.10.0
libtpu: 0.0.40
codegen_flags: <defaults>
</compile_context>

<pallas_src>
import jax
import jax.numpy as jnp
from jax import lax
from jax.experimental import pallas as pl
from jax.experimental.pallas import tpu as pltpu


_LANE = 128
_SUBLANE = 8
_NSPLIT = 2                                   # leading 'parallel' split axis (v7x 2 TCs)
_NEG = float(jnp.finfo(jnp.float32).min)


def _round_up(v, m):
    return ((v + m - 1) // m) * m


def _vmem_config():
    """Generation-aware VMEM sizing: (mosaic vmem_limit_bytes, [T,M]-temp budget)."""
    try:
        cap = int(getattr(pltpu.get_tpu_info(), "vmem_capacity_bytes", 64 << 20))
    except Exception:
        cap = 64 << 20                        # conservative (v7x-sized) default
    limit = int(min(96 << 20, max(32 << 20, (cap * 3) // 4)))
    budget = int(min(56 << 20, max(16 << 20, (cap * 7) // 16)))
    return limit, budget


def _bucket_m(m):
    """Power-of-two bucketing (min 128) of padded cluster counts -> warm jit cache."""
    return max(_LANE, int(pl.next_power_of_2(int(m))))


def _pick_tile_n(n, m_pad, factor, budget, nsplit=1):
    """Largest row tile (multiple of 128, <=1024) such that `factor` live [T, m_pad]
    f32 temporaries stay inside the per-kernel VMEM budget."""
    t = 1024
    while t > _LANE and t * m_pad * 4 * factor > budget:
        t //= 2
    # TODO(synk): if even T=128 blows the budget (m_pad >~ 8-16K), an M tile axis with
    # carried partial min/argmin and accumulator indexing would be needed; not done.
    t = min(t, _round_up(max(1, -(-n // nsplit)), _LANE))
    return max(_LANE, t)


# ---------------------------------------------------------------------------
# Kernel A: segment-sum of packed [pos, batch, 1] rows by cluster id.
#   One [T, M] one-hot, MXU contracts the row axis -> lane-dense [8, M] accumulator.
#   Grid: (split, row_tiles_per_split) = ("parallel", "arbitrary").
# ---------------------------------------------------------------------------
def _segsum_kernel(packedT_ref, ccol_ref, meta_ref):
    # packedT_ref: [8, T] f32 rows = [px, py, pz, batch, 1, 0, 0, 0]
    # ccol_ref   : [T, 1] i32 cluster id (>= M for padded rows -> zero one-hot column)
    # meta_ref   : [8, M] f32 accumulator for this split
    @pl.when(pl.program_id(1) == 0)
    def _():
        meta_ref[...] = jnp.zeros(meta_ref.shape, meta_ref.dtype)

    t = ccol_ref.shape[0]
    m = meta_ref.shape[1]
    onehot = (ccol_ref[...] == lax.broadcasted_iota(jnp.int32, (t, m), 1)
              ).astype(jnp.float32)                                        # [T, M]
    meta_ref[...] += jnp.dot(packedT_ref[...], onehot,
                             preferred_element_type=jnp.float32)           # [8, M]


# ---------------------------------------------------------------------------
# Kernel B: batch-restricted nearest-centroid assignment for one tile of rows.
#   dist = |c|^2 - 2<p,c> from a single [T,4] x [4,M] MXU matmul.
# ---------------------------------------------------------------------------
def _nearest_kernel(posext_ref, bcol_ref, rhs_ref, cbrow_ref, out_ref):
    # posext_ref: [T, 4] f32 = [px, py, pz, 1]   (padded rows all-zero)
    # bcol_ref  : [T, 1] i32 batch id (-1 for padded rows)
    # rhs_ref   : [4, M] f32 rows 0-2 = -2*centroid^T, row 3 = |centroid|^2 (+1e30 empty)
    # cbrow_ref : [1, M] i32 centroid batch id (-2^30 sentinel for empty clusters)
    # out_ref   : [T, 1] i32 nearest centroid index
    t = posext_ref.shape[0]
    m = rhs_ref.shape[1]
    dist = jnp.dot(posext_ref[...], rhs_ref[...],
                   preferred_element_type=jnp.float32)                     # [T, M]
    valid = cbrow_ref[...] == bcol_ref[...]                                # [T, M]
    masked = jnp.where(valid, dist, jnp.float32(1e30))
    minval = jnp.min(masked, axis=1, keepdims=True)                        # [T, 1]
    iota = lax.broadcasted_iota(jnp.int32, (t, m), 1)
    idx = jnp.min(jnp.where(masked <= minval, iota, jnp.int32(m)),
                  axis=1, keepdims=True)
    out_ref[...] = idx
    # TODO(synk): use jnp.argmin(masked, axis=1) (one pass) once variadic reductions
    # lower reliably on Mosaic.


# ---------------------------------------------------------------------------
# Kernel C (aggr='max'): scatter-max of one 8-channel group of one row tile into a
#   lane-dense [8, M] accumulator.  Grid: (split, channel_group, row_tile).
# ---------------------------------------------------------------------------
def _poolmax_kernel(xg_ref, ccol_ref, xout_ref):
    # xg_ref  : [1, T, 8] f32 (one channel group, channels in lanes 0..7)
    # ccol_ref: [T, 1] i32 cluster id (>= M for padded rows)
    # xout_ref: [8, M] f32 running max for this (split, channel group)
    @pl.when(pl.program_id(2) == 0)
    def _():
        xout_ref[...] = jnp.full(xout_ref.shape, _NEG, xout_ref.dtype)

    x = xg_ref[0]                                                          # [T, 8]
    t = x.shape[0]
    m = xout_ref.shape[1]
    onehot = ccol_ref[...] == lax.broadcasted_iota(jnp.int32, (t, m), 1)   # [T, M] bool
    rows = [jnp.max(jnp.where(onehot, x[:, ch:ch + 1], _NEG),
                    axis=0, keepdims=True)
            for ch in range(x.shape[1])]                                   # 8 x [1, M]
    slab = jnp.concatenate(rows, axis=0)                                   # [8, M]
    xout_ref[...] = jnp.maximum(xout_ref[...], slab)


# ---------------------------------------------------------------------------
# Kernel C (aggr='avg'): scatter-sum of features via a bf16 one-hot MXU matmul into
#   a lane-dense [C_pad, M] f32 accumulator.  Grid: (split, row_tile).
# ---------------------------------------------------------------------------
def _poolavg_kernel(xT_ref, ccol_ref, xout_ref):
    # xT_ref  : [C_pad, T] (bf16 or f32) features, transposed
    # ccol_ref: [T, 1] i32 cluster id (>= M for padded rows)
    # xout_ref: [C_pad, M] f32 accumulator for this split
    @pl.when(pl.program_id(1) == 0)
    def _():
        xout_ref[...] = jnp.zeros(xout_ref.shape, xout_ref.dtype)

    t = ccol_ref.shape[0]
    m = xout_ref.shape[1]
    onehot = (ccol_ref[...] == lax.broadcasted_iota(jnp.int32, (t, m), 1)
              ).astype(xT_ref.dtype)                                       # [T, M]
    xout_ref[...] += jnp.dot(xT_ref[...], onehot,
                             preferred_element_type=jnp.float32)           # [C_pad, M]


# ---------------------------------------------------------------------------
# Glue
# ---------------------------------------------------------------------------
def _segment_meta(pos, batch, ids, m_pad, limit, budget):
    """Pallas segment-sum of [pos, batch, 1] by cluster id -> [8, m_pad]."""
    n = pos.shape[0]
    t = _pick_tile_n(n, m_pad, factor=3, budget=budget, nsplit=_NSPLIT)
    n_pad = _round_up(n, _NSPLIT * t)
    tps = (n_pad // t) // _NSPLIT
    packedT = jnp.zeros((8, n_pad), jnp.float32)
    packedT = packedT.at[0:3, :n].set(pos.T)
    packedT = packedT.at[3, :n].set(batch.astype(jnp.float32))
    packedT = packedT.at[4, :n].set(1.0)
    ccol = jnp.full((n_pad, 1), m_pad, jnp.int32).at[:n, 0].set(ids)
    out = pl.pallas_call(
        _segsum_kernel,
        grid=(_NSPLIT, tps),
        in_specs=[pl.BlockSpec((8, t), lambda p, i: (0, p * tps + i)),
                  pl.BlockSpec((t, 1), lambda p, i: (p * tps + i, 0))],
        out_specs=pl.BlockSpec((8, m_pad), lambda p, i: (p, 0)),
        out_shape=jax.ShapeDtypeStruct((_NSPLIT * 8, m_pad), jnp.float32),
        compiler_params=pltpu.CompilerParams(
            dimension_semantics=("parallel", "arbitrary"),
            vmem_limit_bytes=limit),
    )(packedT, ccol)
    return out.reshape(_NSPLIT, 8, m_pad).sum(axis=0)                      # [8, m_pad]


def nv_graph_pooling(x, pos, batch, pool_rad, aggr="max",
                     feature_matmul_dtype=jnp.bfloat16):
    """Forward pass of NVGraphPooling. Returns (pooled_x, pooled_pos, pooled_batch, aux)."""
    assert aggr in ("max", "avg")
    n, c = x.shape
    x = x.astype(jnp.float32)
    pos = pos.astype(jnp.float32)
    batch = batch.astype(jnp.int32)
    limit, budget = _vmem_config()

    # 1) voxel_grid + consecutive_cluster.  Unique over the (batch, cz, cy, cx) tuple
    #    (avoids int32 overflow of the flat linear voxel id) while preserving the
    #    flat-id sort order used by consecutive_cluster.  Host sync: static M1.
    start = pos.min(axis=0) - pool_rad * 0.5
    coords = jnp.floor((pos - start) / pool_rad).astype(jnp.int32)
    keys = jnp.stack([batch, coords[:, 2], coords[:, 1], coords[:, 0]], axis=1)
    uniq1, inv1 = jnp.unique(keys, axis=0, return_inverse=True)
    inv1 = inv1.reshape(-1).astype(jnp.int32)
    m1 = int(uniq1.shape[0])
    m1_pad = _bucket_m(m1)

    # 2a) voxel-cluster centroids via the segment-sum kernel ([8, M1] lane-dense)
    meta1 = _segment_meta(pos, batch, inv1, m1_pad, limit, budget)
    cnt1 = meta1[4]
    safe1 = jnp.maximum(cnt1, 1.0)
    centT = meta1[0:3] / safe1[None, :]                    # [3, M1] centroid^T
    cbatch1 = meta1[3] / safe1                             # exact (batch const per voxel)
    empty1 = cnt1 < 0.5
    bias = jnp.sum(centT * centT, axis=0) + jnp.where(empty1, 1e30, 0.0)
    rhs = jnp.concatenate([-2.0 * centT, bias[None, :]], axis=0)           # [4, M1]
    cbrow = jnp.where(empty1, jnp.int32(-(2 ** 30)),
                      jnp.round(cbatch1).astype(jnp.int32))[None, :]       # [1, M1]

    # 2b) nearest(pos, centroids, batch, centroid_batch) [row-tiled, megacore-parallel]
    t2 = _pick_tile_n(n, m1_pad, factor=5, budget=budget)
    n_pad2 = _round_up(n, t2)
    posext = (jnp.zeros((n_pad2, 4), jnp.float32)
              .at[:n, 0:3].set(pos).at[:n, 3].set(1.0))
    bcol = jnp.full((n_pad2, 1), -1, jnp.int32).at[:n, 0].set(batch)
    idx = pl.pallas_call(
        _nearest_kernel,
        grid=(n_pad2 // t2,),
        in_specs=[pl.BlockSpec((t2, 4), lambda i: (i, 0)),
                  pl.BlockSpec((t2, 1), lambda i: (i, 0)),
                  pl.BlockSpec((4, m1_pad), lambda i: (0, 0)),
                  pl.BlockSpec((1, m1_pad), lambda i: (0, 0))],
        out_specs=pl.BlockSpec((t2, 1), lambda i: (i, 0)),
        out_shape=jax.ShapeDtypeStruct((n_pad2, 1), jnp.int32),
        compiler_params=pltpu.CompilerParams(
            dimension_semantics=("parallel",), vmem_limit_bytes=limit),
    )(posext, bcol, rhs, cbrow)
    cluster2 = idx[:n, 0]

    # 3) consecutive_cluster of the nearest assignment (host sync for static M2)
    uniq2, inv2 = jnp.unique(cluster2, return_inverse=True)
    inv2 = inv2.reshape(-1).astype(jnp.int32)
    m2 = int(uniq2.shape[0])
    m2_pad = _bucket_m(m2)

    # 4a) pooled pos / batch / counts via the same segment-sum kernel
    meta2 = _segment_meta(pos, batch, inv2, m2_pad, limit, budget)         # [8, M2]
    cnt2 = meta2[4, :m2]                     # every cluster < m2 is non-empty
    pooled_pos = (meta2[0:3, :m2] / cnt2[None, :]).T
    pooled_batch = jnp.round(meta2[3, :m2] / cnt2).astype(jnp.int32)

    # 4b) pooled features
    if aggr == "max":
        cg = _SUBLANE
        c_pad = _round_up(c, cg)
        cgroups = c_pad // cg
        t3 = _pick_tile_n(n, m2_pad, factor=cg + 3, budget=budget, nsplit=_NSPLIT)
        n_pad3 = _round_up(n, _NSPLIT * t3)
        tps3 = (n_pad3 // t3) // _NSPLIT
        xp = jnp.zeros((n_pad3, c_pad), jnp.float32).at[:n, :c].set(x)
        xg = xp.reshape(n_pad3, cgroups, cg).transpose(1, 0, 2)   # [G, N_pad, 8]
        ccol3 = jnp.full((n_pad3, 1), m2_pad, jnp.int32).at[:n, 0].set(inv2)
        xout = pl.pallas_call(
            _poolmax_kernel,
            grid=(_NSPLIT, cgroups, tps3),
            in_specs=[pl.BlockSpec((1, t3, cg),
                                   lambda p, g, i: (g, p * tps3 + i, 0)),
                      pl.BlockSpec((t3, 1),
                                   lambda p, g, i: (p * tps3 + i, 0))],
            out_specs=pl.BlockSpec((cg, m2_pad),
                                   lambda p, g, i: (p * cgroups + g, 0)),
            out_shape=jax.ShapeDtypeStruct((_NSPLIT * c_pad, m2_pad), jnp.float32),
            compiler_params=pltpu.CompilerParams(
                dimension_semantics=("parallel", "parallel", "arbitrary"),
                vmem_limit_bytes=limit),
        )(xg, ccol3)
        xmax = xout.reshape(_NSPLIT, c_pad, m2_pad).max(axis=0)
        pooled_x = xmax[:c, :m2].T
    else:
        c_pad = _round_up(c, _SUBLANE)
        t3 = _pick_tile_n(n, m2_pad, factor=3, budget=budget, nsplit=_NSPLIT)
        n_pad3 = _round_up(n, _NSPLIT * t3)
        tps3 = (n_pad3 // t3) // _NSPLIT
        xT = (jnp.zeros((c_pad, n_pad3), feature_matmul_dtype)
              .at[:c, :n].set(x.T.astype(feature_matmul_dtype)))
        ccol3 = jnp.full((n_pad3, 1), m2_pad, jnp.int32).at[:n, 0].set(inv2)
        xout = pl.pallas_call(
            _poolavg_kernel,
            grid=(_NSPLIT, tps3),
            in_specs=[pl.BlockSpec((c_pad, t3), lambda p, i: (0, p * tps3 + i)),
                      pl.BlockSpec((t3, 1), lambda p, i: (p * tps3 + i, 0))],
            out_specs=pl.BlockSpec((c_pad, m2_pad), lambda p, i: (p, 0)),
            out_shape=jax.ShapeDtypeStruct((_NSPLIT * c_pad, m2_pad), jnp.float32),
            compiler_params=pltpu.CompilerParams(
                dimension_semantics=("parallel", "arbitrary"),
                vmem_limit_bytes=limit),
        )(xT, ccol3)
        xsum = xout.reshape(_NSPLIT, c_pad, m2_pad).sum(axis=0)
        pooled_x = (xsum[:c, :m2] / cnt2[None, :]).T

    # TODO(synk): GraphReg (knn/radius edge_index + edge_attr regeneration) is not
    # reimplemented here — its source is not part of the provided module.
    aux = {"inv1": inv1, "m1": m1, "cluster2": cluster2, "inv2": inv2, "m2": m2}
    return pooled_x, pooled_pos, pooled_batch, aux


# ---------------------------------------------------------------------------
if __name__ == "__main__":
    key = jax.random.PRNGKey(0)
    k1, k2 = jax.random.split(key)

    N, C, B = 64, 8, 2
    pool_rad = 0.25
    pos = jax.random.uniform(k1, (N, 3), jnp.float32)
    x = jax.random.normal(k2, (N, C), jnp.float32)
    batch = jnp.repeat(jnp.arange(B, dtype=jnp.int32), N // B)

    pooled_x, pooled_pos, pooled_batch, aux = nv_graph_pooling(
        x, pos, batch, pool_rad, aggr="max")
    jax.block_until_ready((pooled_x, pooled_pos, pooled_batch))

    # --- sanity / correctness checks against plain-JAX segment ops -----------
    inv1, m1 = aux["inv1"], aux["m1"]
    cluster2, inv2, m2 = aux["cluster2"], aux["inv2"], aux["m2"]

    # voxel-cluster centroids (reference) and nearest-ness of kernel-B output
    cnt1 = jax.ops.segment_sum(jnp.ones((N,), jnp.float32), inv1, m1)
    cpos = jax.ops.segment_sum(pos, inv1, m1) / cnt1[:, None]
    cbatch = jax.ops.segment_max(batch, inv1, m1)
    d = jnp.sum(cpos ** 2, axis=-1)[None, :] - 2.0 * pos @ cpos.T
    d = jnp.where(batch[:, None] == cbatch[None, :], d, jnp.inf)
    chosen = d[jnp.arange(N), cluster2]
    assert bool(jnp.all(chosen <= d.min(axis=1) + 1e-4)), "nearest assignment wrong"
    assert bool(jnp.all(cbatch[cluster2] == batch)), "batch restriction violated"

    # scatter kernels vs. reference segment reductions on the same assignment
    cnt2 = jax.ops.segment_sum(jnp.ones((N,), jnp.float32), inv2, m2)
    ref_x = jax.ops.segment_max(x, inv2, m2)
    ref_pos = jax.ops.segment_sum(pos, inv2, m2) / cnt2[:, None]
    ref_batch = jax.ops.segment_max(batch, inv2, m2)
    assert pooled_x.shape == (m2, C) and pooled_pos.shape == (m2, 3)
    assert bool(jnp.allclose(pooled_x, ref_x, atol=1e-4)), "scatter-max mismatch"
    assert bool(jnp.allclose(pooled_pos, ref_pos, atol=1e-4)), "scatter-mean(pos) mismatch"
    assert bool(jnp.all(pooled_batch == ref_batch)), "pooled batch mismatch"

    # avg aggregation path (features pooled via a bf16 one-hot MXU matmul, f32 accum)
    pooled_xa, pooled_posa, pooled_batcha, auxa = nv_graph_pooling(
        x, pos, batch, pool_rad, aggr="avg")
    jax.block_until_ready((pooled_xa, pooled_posa, pooled_batcha))
    inv2a, m2a = auxa["inv2"], auxa["m2"]
    cnt2a = jax.ops.segment_sum(jnp.ones((N,), jnp.float32), inv2a, m2a)
    x_bf = x.astype(jnp.bfloat16).astype(jnp.float32)        # same operand precision
    ref_xa = jax.ops.segment_sum(x_bf, inv2a, m2a) / cnt2a[:, None]
    assert bool(jnp.allclose(pooled_xa, ref_xa, atol=1e-3)), "scatter-mean(x) mismatch"
    ref_posa = jax.ops.segment_sum(pos, inv2a, m2a) / cnt2a[:, None]
    assert bool(jnp.allclose(pooled_posa, ref_posa, atol=1e-4)), "avg pos mismatch"

    print("KERNEL_OK")
</pallas_src>

<mosaic_0001>
module attributes {stable_mosaic.version = 11 : i64} {
  func.func @_segsum_kernel(%arg0: i32, %arg1: i32, %arg2: memref<8x128xf32, #tpu.memory_space<vmem>>, %arg3: memref<128x1xi32, #tpu.memory_space<vmem>>, %arg4: memref<8x128xf32, #tpu.memory_space<vmem>>) attributes {dimension_semantics = [#tpu.dimension_semantics<parallel>, #tpu.dimension_semantics<arbitrary>], iteration_bounds = array<i64: 2, 1>, scalar_prefetch = 0 : i64, scratch_operands = 0 : i64, tpu.core_type = #tpu.core_type<tc>, window_params = [{transform_indices = @transform_0, window_bounds = array<i64: 8, 128>}, {transform_indices = @transform_1, window_bounds = array<i64: 128, 1>}, {transform_indices = @transform_2, window_bounds = array<i64: 8, 128>}]} {
    %c0_i32 = arith.constant 0 : i32
    %0 = arith.cmpi eq, %arg1, %c0_i32 : i32
    %1 = arith.extui %0 : i1 to i32
    %c0_i32_0 = arith.constant 0 : i32
    %2 = arith.cmpi ne, %1, %c0_i32_0 : i32
    scf.if %2 {
      %cst_8 = arith.constant 0.000000e+00 : f32
      %14 = vector.broadcast %cst_8 : f32 to vector<8x128xf32>
      %c0_9 = arith.constant 0 : index
      %c0_10 = arith.constant 0 : index
      %15 = vector.load %arg4[%c0_9, %c0_10] : memref<8x128xf32, #tpu.memory_space<vmem>>, vector<8x128xf32>
      tpu.vector_store %arg4[%c0_9, %c0_10], %14 {strides = array<i32>} : memref<8x128xf32, #tpu.memory_space<vmem>>, vector<8x128xf32>,
    } else {
    }
    %c0 = arith.constant 0 : index
    %c0_1 = arith.constant 0 : index
    %3 = vector.load %arg3[%c0, %c0_1] : memref<128x1xi32, #tpu.memory_space<vmem>>, vector<128x1xi32>
    %4 = tpu.iota {dimensions = array<i32: 1>} : vector<128x128xi32>
    %5 = vector.broadcast %3 : vector<128x1xi32> to vector<128x128xi32>
    %6 = arith.cmpi eq, %5, %4 : vector<128x128xi32>
    %7 = arith.extui %6 : vector<128x128xi1> to vector<128x128xi32>
    %8 = arith.sitofp %7 : vector<128x128xi32> to vector<128x128xf32>
    %c0_2 = arith.constant 0 : index
    %c0_3 = arith.constant 0 : index
    %9 = vector.load %arg4[%c0_2, %c0_3] : memref<8x128xf32, #tpu.memory_space<vmem>>, vector<8x128xf32>
    %c0_4 = arith.constant 0 : index
    %c0_5 = arith.constant 0 : index
    %10 = vector.load %arg2[%c0_4, %c0_5] : memref<8x128xf32, #tpu.memory_space<vmem>>, vector<8x128xf32>
    %cst = arith.constant dense<0.000000e+00> : vector<8x128xf32>
    %11 = tpu.matmul %10, %8, %cst {dimension_numbers = #tpu.dot_dimension_numbers<[1], [0], [0], [1], [0, 0, 1, 1], [], []>} : vector<8x128xf32>, vector<128x128xf32>, vector<8x128xf32> -> vector<8x128xf32>
    %12 = arith.addf %9, %11 : vector<8x128xf32>
    %c0_6 = arith.constant 0 : index
    %c0_7 = arith.constant 0 : index
    %13 = vector.load %arg4[%c0_6, %c0_7] : memref<8x128xf32, #tpu.memory_space<vmem>>, vector<8x128xf32>
    tpu.vector_store %arg4[%c0_6, %c0_7], %12 {strides = array<i32>} : memref<8x128xf32, #tpu.memory_space<vmem>>, vector<8x128xf32>,
    return
  }
  func.func @transform_0(%arg0: i32, %arg1: i32) -> (i32, i32) {
    %c1_i32 = arith.constant 1 : i32
    %0 = arith.muli %arg0, %c1_i32 : i32
    %1 = arith.addi %0, %arg1 : i32
    %c0_i32 = arith.constant 0 : i32
    %c0_i32_0 = arith.constant 0 : i32
    return %c0_i32, %1 : i32, i32
  }
  func.func @transform_1(%arg0: i32, %arg1: i32) -> (i32, i32) {
    %c1_i32 = arith.constant 1 : i32
    %0 = arith.muli %arg0, %c1_i32 : i32
    %1 = arith.addi %0, %arg1 : i32
    %c0_i32 = arith.constant 0 : i32
    %c0_i32_0 = arith.constant 0 : i32
    return %1, %c0_i32 : i32, i32
  }
  func.func @transform_2(%arg0: i32, %arg1: i32) -> (i32, i32) {
    %c0_i32 = arith.constant 0 : i32
    %c0_i32_0 = arith.constant 0 : i32
    return %arg0, %c0_i32 : i32, i32
  }
}

</mosaic_0001>

<llo_original>
// kernel: tpu_custom_call.1
$region0: #{tpu_custom_call.1}
  #allocation0 [shape = 'u32[]', space=smem, size = 0x4, offset = 0x4, fixed_abs, tag = 'smem constant byte address 0x4 - core index']
  #allocation1 [shape = 'u32[144,128]{1,0:T(1,128)}', space=vmem, size = 0x12000, scoped, tag = 'internal scratch']
  %s0 = inlined_call_operand.vmem [shape: f32[8,256], index: 0, kind: input, shape index: {}]
  %s1 = inlined_call_operand.vmem [shape: s32[256,1], index: 1, kind: input, shape index: {}]
  %s2 = inlined_call_operand.hbm [shape: f32[16,128], index: 2, kind: output, shape index: {}]
  %s3 = sld [smem:[#allocation0]]
  $region45: #{tpu_custom_call.1} parent=0
    _
  %s5 = ssub.s32 1, %s3
  %s6 = scalar_select 0, %s5, %s3
  $region1: #{tpu_custom_call.1} parent=0
    #allocation2 [shape = 'u8[8192]{0}', space=vmem, size = 0x2000, scoped, tag = 'output window, operand 0']
    #allocation3 [shape = 's32[2]{0}', space=sflag, size = 0x8, scoped, tag = 'scoped memory for tpu_custom_call.1']
    %7 = vsyncpa [#allocation3], 0
    %s8 = scalar_lea.sflag [#allocation3], 1
    %9 = vsyncpa %s8, 0
    loop: start=0, step=1, limit=4
    $region2: #{tpu_custom_call.1} parent=1 // loop_pre_header
      _
    $region3: #{tpu_custom_call.1} parent=1 // loop_header
      %s11 = sphi 0, %s15
      %p12 = scmp.ge.s32.totalorder %s11, 4
      %s18 = sphi 0, %s30
      %s19 = sphi 0, %s26
      %s20 = sphi 0, %s18
      %s21 = sphi 0, %s19
      %s22 = sphi 0, %s20
      %s23 = sphi 0, %s21
      %s35 = sphi 0, %s37
      %s38 = sphi 0, %s35
      %s39 = sphi 0, %s38
      %s55 = sphi 0, %s39
      %s63 = sphi 0, %s65
      %s66 = sphi 0, %s63
      %s67 = sphi 0, %s66
      %s83 = sphi 0, %s67
      %s89 = sphi 0, %s91
      %s92 = sphi 0, %s89
      %s93 = sphi 0, %s92
      %s109 = sphi 0, %s93
    $region4: #{tpu_custom_call.1} parent=1 // loop_header_branch
      %14 = sbr.rel (%p12) target = $region8
    $region5: #{tpu_custom_call.1} parent=1 // loop_body
      %s16 = ssub.s32 %s11, 1
      %s17 = ssub.s32 %s11, 2
      %s24 = sadd.s32 1, %s19
      %p25 = scmp.ge.s32.totalorder %s24, 1
      %s26 = scalar_select %p25, 0, %s24
      %s27 = sadd.s32 1, %s18
      %s28 = scalar_select %p25, %s27, %s18
      %p29 = scmp.ge.s32.totalorder %s28, 2
      %s30 = scalar_select %p29, 0, %s28
      %s31 = sadd.s32 %s18, %s19
      %s32 = sadd.s32 %s30, %s26
      %s33 = ssub.s32 %s31, %s32
      %p34 = scmp.eq.s32.totalorder %s33, 0
      %s36 = sadd.s32 %s35, 1
      %s37 = scalar_select %p34, %s35, %s36
      %p40 = pneg %p34
      %p41 = scmp.eq.s32.totalorder %s11, 1
      %p42 = por %p40, %p41
      %p43 = scmp.ne.s32.totalorder %s35, %s38
      %p44 = scmp.eq.s32.totalorder %s11, 0
      %p45 = por %p43, %p44
      %p46 = scmp.ne.s32.totalorder %s35, %s38
      %p47 = scmp.eq.s32.totalorder %s16, 1
      %p48 = por %p46, %p47
      %p49 = scmp.ne.s32.totalorder %s38, %s39
      %p50 = scmp.eq.s32.totalorder %s16, 0
      %p51 = por %p49, %p50
      %p52 = scmp.ne.s32.totalorder %s38, %s39
      %p53 = scmp.eq.s32.totalorder %s17, 1
      %p54 = por %p52, %p53
      %p56 = scmp.ne.s32.totalorder %s39, %s55
      %p57 = scmp.eq.s32.totalorder %s17, 0
      %p58 = por %p56, %p57
      %s59 = sadd.s32 %s18, %s19
      %s60 = sadd.s32 %s30, %s26
      %s61 = ssub.s32 %s59, %s60
      %p62 = scmp.eq.s32.totalorder %s61, 0
      %s64 = sadd.s32 %s63, 1
      %s65 = scalar_select %p62, %s63, %s64
      %p68 = pneg %p62
      %p69 = scmp.eq.s32.totalorder %s11, 1
      %p70 = por %p68, %p69
      %p71 = scmp.ne.s32.totalorder %s63, %s66
      %p72 = scmp.eq.s32.totalorder %s11, 0
      %p73 = por %p71, %p72
      %p74 = scmp.ne.s32.totalorder %s63, %s66
      %p75 = scmp.eq.s32.totalorder %s16, 1
      %p76 = por %p74, %p75
      %p77 = scmp.ne.s32.totalorder %s66, %s67
      %p78 = scmp.eq.s32.totalorder %s16, 0
      %p79 = por %p77, %p78
      %p80 = scmp.ne.s32.totalorder %s66, %s67
      %p81 = scmp.eq.s32.totalorder %s17, 1
      %p82 = por %p80, %p81
      %p84 = scmp.ne.s32.totalorder %s67, %s83
      %p85 = scmp.eq.s32.totalorder %s17, 0
      %p86 = por %p84, %p85
      %s87 = ssub.s32 %s18, %s30
      %p88 = scmp.eq.s32.totalorder %s87, 0
      %s90 = sadd.s32 %s89, 1
      %s91 = scalar_select %p88, %s89, %s90
      %p94 = pneg %p88
      %p95 = scmp.eq.s32.totalorder %s11, 1
      %p96 = por %p94, %p95
      %p97 = scmp.ne.s32.totalorder %s89, %s92
      %p98 = scmp.eq.s32.totalorder %s11, 0
      %p99 = por %p97, %p98
      %p100 = scmp.ne.s32.totalorder %s89, %s92
      %p101 = scmp.eq.s32.totalorder %s16, 1
      %p102 = por %p100, %p101
      %p103 = scmp.ne.s32.totalorder %s92, %s93
      %p104 = scmp.eq.s32.totalorder %s16, 0
      %p105 = por %p103, %p104
      %p106 = scmp.ne.s32.totalorder %s92, %s93
      %p107 = scmp.eq.s32.totalorder %s17, 1
      %p108 = por %p106, %p107
      %p110 = scmp.ne.s32.totalorder %s93, %s109
      %p111 = scmp.eq.s32.totalorder %s17, 0
      %p112 = por %p110, %p111
      %p113 = scmp.le.s32.totalorder 1, %s11
      %p114 = scmp.lt.s32.totalorder %s11, 3
      %p115 = pnand %p113, %p114
      %p116 = pneg %p115
      // Predicated region
      $region9: #{tpu_custom_call.1} parent=5 // pred_check
        _
      $region10: #{tpu_custom_call.1} parent=5 // pred_check_branch
        %118 = sbr.rel (%p115) target = $region12
      $region11: #{tpu_custom_call.1} parent=5 // pred_region
        %s119 = ssub.s32 %s11, 1
      $region12: #{tpu_custom_call.1} parent=5 // pred_fallthru
        _
      %p120 = scmp.lt.s32.totalorder %s11, 2
      // Predicated region
      $region13: #{tpu_custom_call.1} parent=5 // pred_check
        %p121 = pneg %p120
      $region14: #{tpu_custom_call.1} parent=5 // pred_check_branch
        %123 = sbr.rel (%p121) target = $region16
      $region15: #{tpu_custom_call.1} parent=5 // pred_region
        // Predicated region
        $region17: #{tpu_custom_call.1} parent=15 // pred_check
          %p124 = pneg %p45
        $region18: #{tpu_custom_call.1} parent=15 // pred_check_branch
          %126 = sbr.rel (%p124) target = $region20
        $region19: #{tpu_custom_call.1} parent=15 // pred_region
          %s127 = sadd.s32 %s18, %s19
          %p128 = scmp.lt.s32.totalorder %s127, 1
          %s129 = scalar_select %p128, %s127, 1
          %s130 = smul.addr %s129, 8
          %s131 = scalar_lea.vmem %s0, %s130
          %s132 = sadd.s32 %s18, %s19
        $region20: #{tpu_custom_call.1} parent=15 // pred_fallthru
          _
        // Predicated region
        $region21: #{tpu_custom_call.1} parent=15 // pred_check
          %p133 = pneg %p73
        $region22: #{tpu_custom_call.1} parent=15 // pred_check_branch
          %135 = sbr.rel (%p133) target = $region24
        $region23: #{tpu_custom_call.1} parent=15 // pred_region
          %s136 = sadd.s32 %s18, %s19
          %s137 = smul.u32 16, %s136
          %p138 = scmp.lt.s32.totalorder %s137, 31
          %s139 = scalar_select %p138, %s137, 31
          %s140 = smul.addr %s139, 8
          %s141 = scalar_lea.vmem %s1, %s140
          %s142 = sadd.s32 %s18, %s19
          %s143 = smul.u32 16, %s142
        $region24: #{tpu_custom_call.1} parent=15 // pred_fallthru
          _
      $region16: #{tpu_custom_call.1} parent=5 // pred_fallthru
        _
      %p144 = scmp.le.s32.totalorder 1, %s11
      %p145 = scmp.lt.s32.totalorder %s11, 3
      %p146 = pnand %p144, %p145
      %p147 = pneg %p146
      // Predicated region
      $region25: #{tpu_custom_call.1} parent=5 // pred_check
        _
      $region26: #{tpu_custom_call.1} parent=5 // pred_check_branch
        %149 = sbr.rel (%p146) target = $region28
      $region27: #{tpu_custom_call.1} parent=5 // pred_region
        %s150 = ssub.s32 %s11, 1
        %s151 = sadd.s32 %s20, %s21
        %p152 = scmp.lt.s32.totalorder %s151, 1
        %s153 = scalar_select %p152, %s151, 1
        %s154 = smul.addr %s153, 8
        %s155 = scalar_lea.vmem %s0, %s154
        %p156 = pneg %p51
        %p157 = pneg %p48
        %s158 = sadd.s32 %s20, %s21
        %s159 = smul.u32 16, %s158
        %p160 = scmp.lt.s32.totalorder %s159, 31
        %s161 = scalar_select %p160, %s159, 31
        %s162 = smul.addr %s161, 8
        %s163 = scalar_lea.vmem %s1, %s162
        %p164 = pneg %p79
        %p165 = pneg %p76
        %p166 = pneg %p105
        %p167 = pneg %p102
        %s168 = sand.u32 %s92, 1
        %s169 = scalar_lea.sflag [#allocation3], %s168
        %s170 = sand.u32 %s92, 1
        %s171 = smul.addr %s170, 8
        %s172 = scalar_lea.vmem [#allocation2], %s171
        %s173 = sadd.s32 %s20, %s21
        %p174 = scmp.lt.s32.totalorder %s173, 1
        %s175 = scalar_select %p174, %s173, 1
        %s176 = smul.addr %s175, 8
        %s177 = scalar_lea.vmem %s0, %s176
        %s178 = sadd.s32 %s20, %s21
        %s179 = sadd.s32 %s20, %s21
        %s180 = smul.u32 16, %s179
        %p181 = scmp.lt.s32.totalorder %s180, 31
        %s182 = scalar_select %p181, %s180, 31
        %s183 = smul.addr %s182, 8
        %s184 = scalar_lea.vmem %s1, %s183
        %s185 = sadd.s32 %s20, %s21
        %s186 = smul.u32 16, %s185
        %p187 = scmp.eq.s32.totalorder %s21, 0
        // Predicated region
        $region29: #{tpu_custom_call.1} parent=27 // pred_check
          %p188 = pneg %p187
        $region30: #{tpu_custom_call.1} parent=27 // pred_check_branch
          %190 = sbr.rel (%p188) target = $region32
        $region31: #{tpu_custom_call.1} parent=27 // pred_region
          %191 = vst [vmem:[%s172] sm:$0xff] 0.0
        $region32: #{tpu_custom_call.1} parent=27 // pred_fallthru
          _
        %v192 = vld [vmem:[%s184] sm:$0xff]
        %v193 = vld [vmem:[%s184 + $0x8] sm:$0xff]
        %v194 = vld [vmem:[%s184 + $0x10] sm:$0xff]
        %v195 = vld [vmem:[%s184 + $0x18] sm:$0xff]
        %v196 = vld [vmem:[%s184 + $0x20] sm:$0xff]
        %v197 = vld [vmem:[%s184 + $0x28] sm:$0xff]
        %v198 = vld [vmem:[%s184 + $0x30] sm:$0xff]
        %v199 = vld [vmem:[%s184 + $0x38] sm:$0xff]
        %v200 = vld [vmem:[%s184 + $0x40] sm:$0xff]
        %v201 = vld [vmem:[%s184 + $0x48] sm:$0xff]
        %v202 = vld [vmem:[%s184 + $0x50] sm:$0xff]
        %v203 = vld [vmem:[%s184 + $0x58] sm:$0xff]
        %v204 = vld [vmem:[%s184 + $0x60] sm:$0xff]
        %v205 = vld [vmem:[%s184 + $0x68] sm:$0xff]
        %v206 = vld [vmem:[%s184 + $0x70] sm:$0xff]
        %v207 = vld [vmem:[%s184 + $0x78] sm:$0xff]
        %v208 = vlaneseq
        %v209 = vand.u32 %v208, 127
        %210 = vset.pattern.permute.xlu0 0
        %211 = vperm.xlu0 %210, %v192
        %v212 = vpop.permute.xlu0 %211
        %213 = vset.pattern.permute.xlu0 0
        %214 = vperm.xlu0 %213, %v193
        %v215 = vpop.permute.xlu0 %214
        %216 = vset.pattern.permute.xlu0 0
        %217 = vperm.xlu0 %216, %v194
        %v218 = vpop.permute.xlu0 %217
        %219 = vset.pattern.permute.xlu0 0
        %220 = vperm.xlu0 %219, %v195
        %v221 = vpop.permute.xlu0 %220
        %222 = vset.pattern.permute.xlu0 0
        %223 = vperm.xlu0 %222, %v196
        %v224 = vpop.permute.xlu0 %223
        %225 = vset.pattern.permute.xlu0 0
        %226 = vperm.xlu0 %225, %v197
        %v227 = vpop.permute.xlu0 %226
        %228 = vset.pattern.permute.xlu0 0
        %229 = vperm.xlu0 %228, %v198
        %v230 = vpop.permute.xlu0 %229
        %231 = vset.pattern.permute.xlu0 0
        %232 = vperm.xlu0 %231, %v199
        %v233 = vpop.permute.xlu0 %232
        %234 = vset.pattern.permute.xlu0 0
        %235 = vperm.xlu0 %234, %v200
        %v236 = vpop.permute.xlu0 %235
        %237 = vset.pattern.permute.xlu0 0
        %238 = vperm.xlu0 %237, %v201
        %v239 = vpop.permute.xlu0 %238
        %240 = vset.pattern.permute.xlu0 0
        %241 = vperm.xlu0 %240, %v202
        %v242 = vpop.permute.xlu0 %241
        %243 = vset.pattern.permute.xlu0 0
        %244 = vperm.xlu0 %243, %v203
        %v245 = vpop.permute.xlu0 %244
        %246 = vset.pattern.permute.xlu0 0
        %247 = vperm.xlu0 %246, %v204
        %v248 = vpop.permute.xlu0 %247
        %249 = vset.pattern.permute.xlu0 0
        %250 = vperm.xlu0 %249, %v205
        %v251 = vpop.permute.xlu0 %250
        %252 = vset.pattern.permute.xlu0 0
        %253 = vperm.xlu0 %252, %v206
        %v254 = vpop.permute.xlu0 %253
        %255 = vset.pattern.permute.xlu0 0
        %256 = vperm.xlu0 %255, %v207
        %v257 = vpop.permute.xlu0 %256
        %vm258 = vcmp.eq.s32.totalorder %v212, %v209
        %vm259 = vcmp.eq.s32.totalorder %v215, %v209
        %vm260 = vcmp.eq.s32.totalorder %v218, %v209
        %vm261 = vcmp.eq.s32.totalorder %v221, %v209
        %vm262 = vcmp.eq.s32.totalorder %v224, %v209
        %vm263 = vcmp.eq.s32.totalorder %v227, %v209
        %vm264 = vcmp.eq.s32.totalorder %v230, %v209
        %vm265 = vcmp.eq.s32.totalorder %v233, %v209
        %vm266 = vcmp.eq.s32.totalorder %v236, %v209
        %vm267 = vcmp.eq.s32.totalorder %v239, %v209
        %vm268 = vcmp.eq.s32.totalorder %v242, %v209
        %vm269 = vcmp.eq.s32.totalorder %v245, %v209
        %vm270 = vcmp.eq.s32.totalorder %v248, %v209
        %vm271 = vcmp.eq.s32.totalorder %v251, %v209
        %vm272 = vcmp.eq.s32.totalorder %v254, %v209
        %vm273 = vcmp.eq.s32.totalorder %v257, %v209
        %v274 = vsel %vm258, 1, 0
        %v275 = vsel %vm259, 1, 0
        %v276 = vsel %vm260, 1, 0
        %v277 = vsel %vm261, 1, 0
        %v278 = vsel %vm262, 1, 0
        %v279 = vsel %vm263, 1, 0
        %v280 = vsel %vm264, 1, 0
        %v281 = vsel %vm265, 1, 0
        %v282 = vsel %vm266, 1, 0
        %v283 = vsel %vm267, 1, 0
        %v284 = vsel %vm268, 1, 0
        %v285 = vsel %vm269, 1, 0
        %v286 = vsel %vm270, 1, 0
        %v287 = vsel %vm271, 1, 0
        %v288 = vsel %vm272, 1, 0
        %v289 = vsel %vm273, 1, 0
        %v290 = vcvt.s32.f32 %v274
        %v291 = vcvt.s32.f32 %v275
        %v292 = vcvt.s32.f32 %v276
        %v293 = vcvt.s32.f32 %v277
        %v294 = vcvt.s32.f32 %v278
        %v295 = vcvt.s32.f32 %v279
        %v296 = vcvt.s32.f32 %v280
        %v297 = vcvt.s32.f32 %v281
        %v298 = vcvt.s32.f32 %v282
        %v299 = vcvt.s32.f32 %v283
        %v300 = vcvt.s32.f32 %v284
        %v301 = vcvt.s32.f32 %v285
        %v302 = vcvt.s32.f32 %v286
        %v303 = vcvt.s32.f32 %v287
        %v304 = vcvt.s32.f32 %v288
        %v305 = vcvt.s32.f32 %v289
        %v306 = vld [vmem:[%s172] sm:$0xff]
        %v307 = vld [vmem:[%s177] sm:$0xff]
        %308 = vmatprep.subr.mxu0 0.0
        %309 = vmatpush1.msra.mxu0 %v305
        %310 = vmatprep.subr.mxu0 0.0
        %311 = vmatpush1.msra.mxu0 %v304
        %312 = vmatprep.subr.mxu0 0.0
        %313 = vmatpush1.msra.mxu0 %v303
        %314 = vmatprep.subr.mxu0 0.0
        %315 = vmatpush1.msra.mxu0 %v302
        %316 = vmatprep.subr.mxu0 0.0
        %317 = vmatpush1.msra.mxu0 %v301
        %318 = vmatprep.subr.mxu0 0.0
        %319 = vmatpush1.msra.mxu0 %v300
        %320 = vmatprep.subr.mxu0 0.0
        %321 = vmatpush1.msra.mxu0 %v299
        %322 = vmatprep.subr.mxu0 0.0
        %323 = vmatpush1.msra.mxu0 %v298
        %324 = vmatprep.subr.mxu0 0.0
        %325 = vmatpush1.msra.mxu0 %v297
        %326 = vmatprep.subr.mxu0 0.0
        %327 = vmatpush1.msra.mxu0 %v296
        %328 = vmatprep.subr.mxu0 0.0
        %329 = vmatpush1.msra.mxu0 %v295
        %330 = vmatprep.subr.mxu0 0.0
        %331 = vmatpush1.msra.mxu0 %v294
        %332 = vmatprep.subr.mxu0 0.0
        %333 = vmatpush1.msra.mxu0 %v293
        %334 = vmatprep.subr.mxu0 0.0
        %335 = vmatpush1.msra.mxu0 %v292
        %336 = vmatprep.subr.mxu0 0.0
        %337 = vmatpush1.msra.mxu0 %v291
        %338 = vmatprep.subr.mxu0 0.0
        %339 = vmatpush1.msra.mxu0 %v290
        %340 = vmatprep.subr.mxu0 0.0
        %341 = vmatpush2.msra.mxu0 0.0
        %342 = vmatprep.subr.mxu0 0.0
        %343 = vmatpush2.msra.mxu0 0.0
        %344 = vmatprep.subr.mxu0 0.0
        %345 = vmatpush2.msra.mxu0 0.0
        %346 = vmatprep.subr.mxu0 0.0
        %347 = vmatpush2.msra.mxu0 0.0
        %348 = vmatprep.subr.mxu0 0.0
        %349 = vmatpush2.msra.mxu0 0.0
        %350 = vmatprep.subr.mxu0 0.0
        %351 = vmatpush2.msra.mxu0 0.0
        %352 = vmatprep.subr.mxu0 0.0
        %353 = vmatpush2.msra.mxu0 0.0
        %354 = vmatprep.subr.mxu0 0.0
        %355 = vmatpush2.msra.mxu0 0.0
        %356 = vmatprep.subr.mxu0 0.0
        %357 = vmatpush2.msra.mxu0 0.0
        %358 = vmatprep.subr.mxu0 0.0
        %359 = vmatpush2.msra.mxu0 0.0
        %360 = vmatprep.subr.mxu0 0.0
        %361 = vmatpush2.msra.mxu0 0.0
        %362 = vmatprep.subr.mxu0 0.0
        %363 = vmatpush2.msra.mxu0 0.0
        %364 = vmatprep.subr.mxu0 0.0
        %365 = vmatpush2.msra.mxu0 0.0
        %366 = vmatprep.subr.mxu0 0.0
        %367 = vmatpush2.msra.mxu0 0.0
        %368 = vmatprep.subr.mxu0 0.0
        %369 = vmatpush2.msra.mxu0 0.0
        %370 = vmatprep.subr.mxu0 0.0
        %371 = vmatpush2.msra.mxu0 0.0
        %372 = vmatprep.mubr.f32.mxu0 0.0
        %373 = vmatmul.mubr.f32.gmra.mxu0 %v307
        %v374 = vpop.f32.mrf.mxu0
        %v375 = vadd.f32 0.0, %v374
        %v376 = vpop.f32.mrf.mxu0
        %377 = vdwg.mxu0
        %v378 = vadd.f32 %v306, %v375
        %379 = vst [vmem:[%s172] sm:$0xff] %v378
        %s380 = sand.u32 %s92, 1
        %s381 = scalar_lea.sflag [#allocation3], %s380
        %s382 = sand.u32 %s92, 1
        %s383 = smul.addr %s382, 8
        %s384 = scalar_lea.vmem [#allocation2], %s383
        // Predicated region
        $region33: #{tpu_custom_call.1} parent=27 // pred_check
          %p385 = pneg %p102
        $region34: #{tpu_custom_call.1} parent=27 // pred_check_branch
          %387 = sbr.rel (%p385) target = $region36
        $region35: #{tpu_custom_call.1} parent=27 // pred_region
          %s389 = ssub.s32 128, 128
          %390 = vsyncadd %s381, %s389
          %s391 = smul.addr %s20, 128
          %s392 = scalar_lea.hbm %s2, %s391
          %s394 = sshll.u32 %s384, 4
          %s395 = int_to_ptr.vmem [resolvable:$true] %s394
          %397 = dma.vmem_to_hbm [thread:$0]  %s395, 128, %s392, %s381
        $region36: #{tpu_custom_call.1} parent=27 // pred_fallthru
          _
      $region28: #{tpu_custom_call.1} parent=5 // pred_fallthru
        _
      %p398 = scmp.le.s32.totalorder 2, %s11
      // Predicated region
      $region37: #{tpu_custom_call.1} parent=5 // pred_check
        %p399 = pneg %p398
      $region38: #{tpu_custom_call.1} parent=5 // pred_check_branch
        %401 = sbr.rel (%p399) target = $region40
      $region39: #{tpu_custom_call.1} parent=5 // pred_region
        %s402 = ssub.s32 %s11, 2
        // Predicated region
        $region41: #{tpu_custom_call.1} parent=39 // pred_check
          %p403 = pneg %p108
        $region42: #{tpu_custom_call.1} parent=39 // pred_check_branch
          %405 = sbr.rel (%p403) target = $region44
        $region43: #{tpu_custom_call.1} parent=39 // pred_region
          %s406 = sand.u32 %s93, 1
          %s407 = scalar_lea.sflag [#allocation3], %s406
          %s408 = sand.u32 %s93, 1
          %s409 = smul.addr %s408, 8
          %s410 = scalar_lea.vmem [#allocation2], %s409
          %411 = dma.done %s407, 128
        $region44: #{tpu_custom_call.1} parent=39 // pred_fallthru
          _
      $region40: #{tpu_custom_call.1} parent=5 // pred_fallthru
        _
    $region6: #{tpu_custom_call.1} parent=1 // loop_footer
      %s15 = sadd.s32 1, %s11
    $region7: #{tpu_custom_call.1} parent=1 // loop_footer_branch
      %10 = sbr.rel target = $region3
    $region8: #{tpu_custom_call.1} parent=1 // loop_exit
      _
    %412 = vsyncpa [#allocation3], 1
    %s413 = scalar_lea.sflag [#allocation3], 1
    %414 = vsyncpa %s413, 1

</llo_original>
